<compile_context>
chip_gen: v7x
topology: tpu7x:2x2x1
jax: 0.10.0
libtpu: 0.0.40
codegen_flags: <defaults>
</compile_context>

<pallas_src>
import jax
import jax.numpy as jnp
from jax.experimental import pallas as pl
from jax.experimental.pallas import tpu as pltpu


def always_kernel(val_ref, out_ref):
    # forward(*args, **kwargs): inputs ignored -> emit the stored constant.
    out_ref[...] = val_ref[...]


def _pick_tile_d(d: int) -> int:
    """Largest divisor of d that is <= 512 and a multiple of 8; else full d."""
    if d <= 512:
        return d
    for t in range(512, 7, -8):
        if d % t == 0:
            return t
    return d  # full-extent block is always layout-legal


def always_forward(val, *args, **kwargs):
    """Pallas equivalent of Always(val)(*args, **kwargs): returns `val`."""
    del args, kwargs  # ignored, exactly like the PyTorch module
    D, R = val.shape
    tile_d = _pick_tile_d(D)
    grid_d = D // tile_d

    return pl.pallas_call(
        always_kernel,
        out_shape=jax.ShapeDtypeStruct((D, R), val.dtype),
        grid=(grid_d,),
        in_specs=[
            # the stored constant, tiled along D; full (lane-dense) last dim
            pl.BlockSpec((tile_d, R), lambda i: (i, 0)),
        ],
        out_specs=pl.BlockSpec((tile_d, R), lambda i: (i, 0)),
        # output reuses val's buffer: the op is (value-wise) the identity on val
        input_output_aliases={0: 0},
        compiler_params=pltpu.CompilerParams(
            dimension_semantics=("parallel",),
        ),
    )(val)


if __name__ == "__main__":
    key = jax.random.PRNGKey(0)
    kx, kv = jax.random.split(key)

    # "forward" input (ignored by the module, as in PyTorch)
    x = jax.random.normal(kx, (2, 4, 16, 16), dtype=jnp.float32)

    # the constant held by Always(val) -- deterministic, projection-matrix-like
    val = jax.random.normal(kv, (32, 128), dtype=jnp.float32)

    out = always_forward(val, x, some_kwarg=None)
    out = jax.block_until_ready(out)

    # Always(val)(x) must equal val exactly, independent of x.
    assert out.shape == val.shape and out.dtype == val.dtype
    assert bool(jnp.all(out == val))

    print("KERNEL_OK")
</pallas_src>

<mosaic_0001>
module attributes {stable_mosaic.version = 11 : i64} {
  func.func @always_kernel(%arg0: i32, %arg1: memref<32x128xf32, #tpu.memory_space<vmem>>, %arg2: memref<32x128xf32, #tpu.memory_space<vmem>>) attributes {dimension_semantics = [#tpu.dimension_semantics<parallel>], iteration_bounds = array<i64: 1>, scalar_prefetch = 0 : i64, scratch_operands = 0 : i64, tpu.core_type = #tpu.core_type<tc>, window_params = [{transform_indices = @transform_0, window_bounds = array<i64: 32, 128>}, {transform_indices = @transform_1, window_bounds = array<i64: 32, 128>}]} {
    %c0 = arith.constant 0 : index
    %c0_0 = arith.constant 0 : index
    %0 = vector.load %arg1[%c0, %c0_0] : memref<32x128xf32, #tpu.memory_space<vmem>>, vector<32x128xf32>
    %c0_1 = arith.constant 0 : index
    %c0_2 = arith.constant 0 : index
    %1 = vector.load %arg2[%c0_1, %c0_2] : memref<32x128xf32, #tpu.memory_space<vmem>>, vector<32x128xf32>
    tpu.vector_store %arg2[%c0_1, %c0_2], %0 {strides = array<i32>} : memref<32x128xf32, #tpu.memory_space<vmem>>, vector<32x128xf32>,
    return
  }
  func.func @transform_0(%arg0: i32) -> (i32, i32) {
    %c0_i32 = arith.constant 0 : i32
    %c0_i32_0 = arith.constant 0 : i32
    return %arg0, %c0_i32 : i32, i32
  }
  func.func @transform_1(%arg0: i32) -> (i32, i32) {
    %c0_i32 = arith.constant 0 : i32
    %c0_i32_0 = arith.constant 0 : i32
    return %arg0, %c0_i32 : i32, i32
  }
}

</mosaic_0001>

<llo_original>
// kernel: tpu_custom_call.1
$region0: #{tpu_custom_call.1}
  #allocation0 [shape = 'u32[]', space=smem, size = 0x4, offset = 0x4, fixed_abs, tag = 'smem constant byte address 0x4 - core index']
  #allocation1 [shape = 'u32[144,128]{1,0:T(1,128)}', space=vmem, size = 0x12000, scoped, tag = 'internal scratch']
  %s0 = inlined_call_operand.hbm [shape: f32[32,128], index: 0, kind: input, shape index: {}, may-alias: {0,1}]
  %s1 = inlined_call_operand.hbm [shape: f32[32,128], index: 1, kind: output, shape index: {}, may-alias: {0,1}]
  %s2 = sld [smem:[#allocation0]]
  $region18: #{tpu_custom_call.1} parent=0
    _
  %s4 = ssub.s32 1, %s2
  %s5 = scalar_select 0, %s4, %s2
  $region1: #{tpu_custom_call.1} parent=0
    #allocation2 [shape = 'u8[16384]{0}', space=vmem, size = 0x4000, scoped, tag = 'input window, operand 0, single buffered']
    #allocation3 [shape = 's32[1]{0}', space=sflag, size = 0x4, scoped, tag = 'scoped memory for tpu_custom_call.1']
    #allocation4 [shape = 's32[1]{0}', space=sflag, size = 0x4, scoped, tag = 'scoped memory for tpu_custom_call.1']
    #allocation5 [shape = 'u8[16384]{0}', space=vmem, size = 0x4000, scoped, tag = 'output window, operand 0, single buffered']
    %6 = vsyncpa [#allocation3], 0
    %7 = vsyncpa [#allocation4], 0
    // Predicated region
    $region2: #{tpu_custom_call.1} parent=1 // pred_check
      _
    $region3: #{tpu_custom_call.1} parent=1 // pred_check_branch
      %9 = sbr.rel (0) target = $region5
    $region4: #{tpu_custom_call.1} parent=1 // pred_region
      %s11 = ssub.s32 512, 512
      %12 = vsyncadd [#allocation3], %s11
      %s13 = sshll.u32 [#allocation2], 4
      %s14 = int_to_ptr.vmem [resolvable:$true] %s13
      %19 = dma.hbm_to_vmem [thread:$0]  %s0, 512, %s14, [#allocation3], 128, 128, 8
    $region5: #{tpu_custom_call.1} parent=1 // pred_fallthru
      _
    // Predicated region
    $region6: #{tpu_custom_call.1} parent=1 // pred_check
      _
    $region7: #{tpu_custom_call.1} parent=1 // pred_check_branch
      %21 = sbr.rel (0) target = $region9
    $region8: #{tpu_custom_call.1} parent=1 // pred_region
      %22 = dma.done [#allocation3], 512
    $region9: #{tpu_custom_call.1} parent=1 // pred_fallthru
      _
    %v23 = vld [vmem:[#allocation2] sm:$0xff]
    %v24 = vld [vmem:[#allocation2 + $0x8] sm:$0xff]
    %v25 = vld [vmem:[#allocation2 + $0x10] sm:$0xff]
    %v26 = vld [vmem:[#allocation2 + $0x18] sm:$0xff]
    %27 = vst [vmem:[#allocation5] sm:$0xff] %v23
    %28 = vst [vmem:[#allocation5 + $0x8] sm:$0xff] %v24
    %29 = vst [vmem:[#allocation5 + $0x10] sm:$0xff] %v25
    %30 = vst [vmem:[#allocation5 + $0x18] sm:$0xff] %v26
    // Predicated region
    $region10: #{tpu_custom_call.1} parent=1 // pred_check
      _
    $region11: #{tpu_custom_call.1} parent=1 // pred_check_branch
      %32 = sbr.rel (0) target = $region13
    $region12: #{tpu_custom_call.1} parent=1 // pred_region
      %s34 = ssub.s32 512, 512
      %35 = vsyncadd [#allocation4], %s34
      %s36 = sshll.u32 [#allocation5], 4
      %s37 = int_to_ptr.vmem [resolvable:$true] %s36
      %42 = dma.vmem_to_hbm [thread:$0]  %s37, 512, %s1, [#allocation4], 128, 128, 8
    $region13: #{tpu_custom_call.1} parent=1 // pred_fallthru
      _
    // Predicated region
    $region14: #{tpu_custom_call.1} parent=1 // pred_check
      _
    $region15: #{tpu_custom_call.1} parent=1 // pred_check_branch
      %44 = sbr.rel (0) target = $region17
    $region16: #{tpu_custom_call.1} parent=1 // pred_region
      %45 = dma.done [#allocation4], 512
    $region17: #{tpu_custom_call.1} parent=1 // pred_fallthru
      _
    %46 = vsyncpa [#allocation3], 1
    %47 = vsyncpa [#allocation4], 1

</llo_original>
